<compile_context>
chip_gen: v5e
topology: v5e:2x2
jax: 0.10.0
libtpu: 0.0.40
codegen_flags: <defaults>
</compile_context>

<pallas_src>
import functools
import math

import jax
import jax.numpy as jnp
from jax.experimental import pallas as pl
from jax.experimental.pallas import tpu as pltpu


SLAB_W = 128          # lane-dense width of the packed small-outputs slab
_BIAS_SEG = 128       # lane-aligned bias segment width inside the packed bias row
_LOG_2PI = math.log(2.0 * math.pi)


def _round_up(n, m):
    return ((n + m - 1) // m) * m


# ----------------------------------------------------------------------------
# Fused forward kernel (one grid step = one block of batch rows)
# ----------------------------------------------------------------------------
def _fused_forward_kernel(
    x_ref,          # (BB, F)      flattened input rows
    w1t_ref,        # (F, H)       encoder layer 1, pre-transposed
    wht_ref,        # (H, 2L)      packed [mu | log_var] heads
    midwt_ref,      # (L, H+LH)    packed [decoder_linear1 | laban_linear1]
    outwt_ref,      # (H+LH, OUT_W) block-diagonal [decoder_linear2 | laban_linear2 | 0-pad]
    biases_ref,     # (1, 3*128 + OUT_W) lane-aligned bias segments
    eps_ref,        # (BB, 2L)     packed [eps_encoder | eps_calculateOutput]
    logscale_ref,   # (1, 1)       SMEM scalar
    mu_dec_ref,     # out: (BB, F)
    slab_ref,       # out: (BB, SLAB_W)
    *, L, LH, H, LO, F, OUT_W,
):
    x = x_ref[...]

    # lane-aligned static slices of the packed bias row
    b1 = biases_ref[:, 0:H]
    bh = biases_ref[:, _BIAS_SEG:_BIAS_SEG + 2 * L]
    bm = biases_ref[:, 2 * _BIAS_SEG:2 * _BIAS_SEG + H + LH]
    bo = biases_ref[:, 3 * _BIAS_SEG:3 * _BIAS_SEG + OUT_W]

    # --- encoder: h = relu(x @ W1t + b1); [mu | log_var] = h @ Wht + bh ---
    h = jnp.maximum(
        jnp.dot(x, w1t_ref[...], preferred_element_type=jnp.float32) + b1, 0.0)
    heads = jnp.dot(h, wht_ref[...], preferred_element_type=jnp.float32) + bh
    mu = heads[:, :L]
    log_var = heads[:, L:2 * L]

    # --- two reparameterizations: z = mu + exp(log_var/2) * eps ---
    std = jnp.exp(0.5 * log_var)
    eps = eps_ref[...]
    latent_vector = mu + std * eps[:, :L]        # encoder's own rsample
    lstm_out = mu + std * eps[:, L:2 * L]        # calculateOutput rsample

    # --- packed mid layer: [decoder_hidden | laban_hidden] = relu(z @ Wm + bm) ---
    mid = jnp.maximum(
        jnp.dot(lstm_out, midwt_ref[...], preferred_element_type=jnp.float32) + bm,
        0.0)

    # --- single block-diagonal output matmul: [mu_dec | laban_out | pad] ---
    out = jnp.dot(mid, outwt_ref[...], preferred_element_type=jnp.float32) + bo
    mu_dec = out[:, :F]
    laban_out = out[:, F:F + LO]
    mu_dec_ref[...] = mu_dec

    # --- reconLikelihood = sum_F Normal(mu_dec, exp(log_scale)).log_prob(x) ---
    #   = -sum_F(d^2) * 0.5*exp(-2*log_std) - F * (log_std + 0.5*log 2*pi)
    log_std = logscale_ref[0, 0]                      # SMEM scalar
    inv_2var = 0.5 * jnp.exp(-2.0 * log_std)
    const = log_std + jnp.float32(0.5 * _LOG_2PI)
    diff = x - mu_dec
    ssq = jnp.sum(diff * diff, axis=-1, keepdims=True)       # (BB, 1)
    recon_ll = -ssq * inv_2var - jnp.float32(F) * const      # (BB, 1)

    # --- assemble the lane-dense slab in registers; ONE unmasked store ---
    pad_w = SLAB_W - (4 * L + LO + 1)
    slab = jnp.concatenate(
        [mu, log_var, latent_vector, lstm_out, laban_out, recon_ll,
         jnp.zeros((x.shape[0], pad_w), jnp.float32)],
        axis=-1)
    slab_ref[...] = slab


def _fused_call(params, x_pad, eps_pad, *, Bp, BB, F, H, L, LH, LO, OUT_W):
    bias_w = params["biases"].shape[1]
    kernel = functools.partial(
        _fused_forward_kernel, L=L, LH=LH, H=H, LO=LO, F=F, OUT_W=OUT_W)

    in_specs = [
        pl.BlockSpec((BB, F), lambda i: (i, 0)),                 # x rows
        pl.BlockSpec((F, H), lambda i: (0, 0)),                  # enc layer 1
        pl.BlockSpec((H, 2 * L), lambda i: (0, 0)),              # packed mu/log_var heads
        pl.BlockSpec((L, H + LH), lambda i: (0, 0)),             # packed dec1/laban1
        pl.BlockSpec((H + LH, OUT_W), lambda i: (0, 0)),         # block-diag dec2/laban2
        pl.BlockSpec((1, bias_w), lambda i: (0, 0)),             # packed biases
        pl.BlockSpec((BB, 2 * L), lambda i: (i, 0)),             # packed eps
        pl.BlockSpec(memory_space=pltpu.MemorySpace.SMEM),       # log_scale scalar
    ]
    out_specs = (
        pl.BlockSpec((BB, F), lambda i: (i, 0)),
        pl.BlockSpec((BB, SLAB_W), lambda i: (i, 0)),
    )

    return pl.pallas_call(
        kernel,
        out_shape=(jax.ShapeDtypeStruct((Bp, F), jnp.float32),
                   jax.ShapeDtypeStruct((Bp, SLAB_W), jnp.float32)),
        grid=(Bp // BB,),
        in_specs=in_specs,
        out_specs=out_specs,
        compiler_params=pltpu.CompilerParams(
            dimension_semantics=("parallel",)),
    )(
        x_pad,
        params["enc_w1t"], params["enc_wht"], params["mid_wt"],
        params["out_wt"], params["biases"],
        eps_pad,
        params["log_scale"],
    )


# ----------------------------------------------------------------------------
# Parameter construction (torch.nn.Linear-style init; packed / pre-transposed
# ONCE here).  Returns (packed_params_for_kernel, raw_params_for_reference).
# ----------------------------------------------------------------------------
def make_params(key, T, D, hidden, latent, laban_hidden, laban_out):
    F = T * D
    ks = jax.random.split(key, 14)

    def w(k, shape, fan_in):
        bound = 1.0 / math.sqrt(fan_in)
        return jax.random.uniform(k, shape, jnp.float32, -bound, bound)

    raw = {
        # torch-style (Dout, Din) weights
        "enc_w1": w(ks[0], (hidden, F), F),
        "enc_b1": w(ks[1], (hidden,), F),
        "enc_wmu": w(ks[2], (latent, hidden), hidden),
        "enc_bmu": w(ks[3], (latent,), hidden),
        "enc_wlv": w(ks[4], (latent, hidden), hidden),
        "enc_blv": w(ks[5], (latent,), hidden),
        "dec_w1": w(ks[6], (hidden, latent), latent),
        "dec_b1": w(ks[7], (hidden,), latent),
        "dec_w2": w(ks[8], (F, hidden), hidden),
        "dec_b2": w(ks[9], (F,), hidden),
        "lab_w1": w(ks[10], (laban_hidden, latent), latent),
        "lab_b1": w(ks[11], (laban_hidden,), latent),
        "lab_w2": w(ks[12], (laban_out, laban_hidden), laban_hidden),
        "lab_b2": w(ks[13], (laban_out,), laban_hidden),
        "log_scale": jnp.zeros((1,), jnp.float32),   # nn.Parameter([0.0])
    }

    # block-diagonal merged output head: [decoder_linear2 | laban_linear2 | 0-pad]
    out_w = _round_up(F + laban_out, 128)
    out_wt = jnp.zeros((hidden + laban_hidden, out_w), jnp.float32)
    out_wt = out_wt.at[:hidden, :F].set(raw["dec_w2"].T)
    out_wt = out_wt.at[hidden:, F:F + laban_out].set(raw["lab_w2"].T)

    # single lane-aligned bias row: [enc_b1 |pad| enc_bmu,enc_blv |pad|
    #                                dec_b1,lab_b1 |pad| dec_b2,lab_b2,0-pad]
    bias_w = 3 * _BIAS_SEG + out_w
    biases = jnp.zeros((1, bias_w), jnp.float32)
    biases = biases.at[0, 0:hidden].set(raw["enc_b1"])
    biases = biases.at[0, _BIAS_SEG:_BIAS_SEG + 2 * latent].set(
        jnp.concatenate([raw["enc_bmu"], raw["enc_blv"]]))
    biases = biases.at[0, 2 * _BIAS_SEG:2 * _BIAS_SEG + hidden + laban_hidden].set(
        jnp.concatenate([raw["dec_b1"], raw["lab_b1"]]))
    biases = biases.at[0, 3 * _BIAS_SEG:3 * _BIAS_SEG + F].set(raw["dec_b2"])
    biases = biases.at[0, 3 * _BIAS_SEG + F:3 * _BIAS_SEG + F + laban_out].set(
        raw["lab_b2"])

    packed = {
        "enc_w1t": raw["enc_w1"].T,                                       # (F, H)
        "enc_wht": jnp.concatenate([raw["enc_wmu"].T, raw["enc_wlv"].T],
                                   axis=1),                               # (H, 2L)
        "mid_wt": jnp.concatenate([raw["dec_w1"].T, raw["lab_w1"].T],
                                  axis=1),                                # (L, H+LH)
        "out_wt": out_wt,                                                 # (H+LH, OUT_W)
        "biases": biases,                                                 # (1, 3*128+OUT_W)
        "log_scale": raw["log_scale"].reshape(1, 1),                      # SMEM scalar
    }
    return packed, raw


# ----------------------------------------------------------------------------
# NVAE_LabReg forward (wrapper around the single fused kernel)
# ----------------------------------------------------------------------------
def nvae_labreg_forward(params, x, key, *, dims):
    H, L, LH, LO = dims
    B, T, D = x.shape
    F = T * D
    OUT_W = params["out_wt"].shape[1]

    x_flat = x.reshape(B, F)
    # one (B, 2L) eps: columns [0:L] -> encoder rsample, [L:2L] -> calculateOutput
    eps = jax.random.normal(key, (B, 2 * L), jnp.float32)

    # pad batch to the f32 sublane tile (and to the batch block size)
    bp0 = _round_up(B, 8)
    BB = min(bp0, 128)
    Bp = _round_up(bp0, BB)
    pad = Bp - B
    x_pad = jnp.pad(x_flat, ((0, pad), (0, 0)))
    eps_pad = jnp.pad(eps, ((0, pad), (0, 0)))

    mu_dec_p, slab_p = _fused_call(
        params, x_pad, eps_pad,
        Bp=Bp, BB=BB, F=F, H=H, L=L, LH=LH, LO=LO, OUT_W=OUT_W)

    slab = slab_p[:B]
    mu = slab[:, 0:L]
    log_var = slab[:, L:2 * L]
    latent_vector = slab[:, 2 * L:3 * L]
    lstm_out = slab[:, 3 * L:4 * L]
    laban_out = slab[:, 4 * L:4 * L + LO]
    recon_likelihood = slab[:, 4 * L + LO]          # (B,), matches .sum(dim=(1,2))
    mu_dec = mu_dec_p[:B].reshape(B, T, D)

    return mu_dec, lstm_out, latent_vector, mu, log_var, recon_likelihood, laban_out


# ----------------------------------------------------------------------------
# Pure-JAX reference (independent of the packed layout)
# ----------------------------------------------------------------------------
def nvae_labreg_reference(raw, x, key, L):
    B, T, D = x.shape
    F = T * D
    x_flat = x.reshape(B, F)
    eps = jax.random.normal(key, (B, 2 * L), jnp.float32)

    h = jnp.maximum(x_flat @ raw["enc_w1"].T + raw["enc_b1"], 0.0)
    mu = h @ raw["enc_wmu"].T + raw["enc_bmu"]
    log_var = h @ raw["enc_wlv"].T + raw["enc_blv"]
    std = jnp.exp(0.5 * log_var)
    latent_vector = mu + std * eps[:, :L]
    lstm_out = mu + std * eps[:, L:]

    lab_h = jnp.maximum(lstm_out @ raw["lab_w1"].T + raw["lab_b1"], 0.0)
    laban_out = lab_h @ raw["lab_w2"].T + raw["lab_b2"]

    dh = jnp.maximum(lstm_out @ raw["dec_w1"].T + raw["dec_b1"], 0.0)
    mu_dec_flat = dh @ raw["dec_w2"].T + raw["dec_b2"]

    log_std = raw["log_scale"][0]
    var = jnp.exp(log_std) ** 2
    diff = x_flat - mu_dec_flat
    logp = -(diff * diff) / (2.0 * var) - log_std - 0.5 * _LOG_2PI
    recon_ll = jnp.sum(logp, axis=-1)

    return (mu_dec_flat.reshape(B, T, D), lstm_out, latent_vector, mu,
            log_var, recon_ll, laban_out)


# ----------------------------------------------------------------------------
# Main
# ----------------------------------------------------------------------------
if __name__ == "__main__":
    B, T, D = 2, 8, 16          # x: (batch, seq, features) -> F = 128 (lane-dense)
    HIDDEN = 32                 # encoder/decoder hidden
    LATENT = 16                 # latent dim (LabanReg input_dim)
    LABAN_HIDDEN = 32           # LabanReg hidden_dims[0]
    LABAN_OUT = 8               # LabanReg output_dim
    assert 4 * LATENT + LABAN_OUT + 1 <= SLAB_W

    key = jax.random.PRNGKey(0)
    k_param, k_x, k_fwd = jax.random.split(key, 3)

    params, raw = make_params(k_param, T, D, HIDDEN, LATENT, LABAN_HIDDEN, LABAN_OUT)
    x = jax.random.normal(k_x, (B, T, D), jnp.float32)

    dims = (HIDDEN, LATENT, LABAN_HIDDEN, LABAN_OUT)
    fwd = jax.jit(functools.partial(nvae_labreg_forward, dims=dims))
    outs = jax.block_until_ready(fwd(params, x, k_fwd))
    ref_outs = jax.block_until_ready(nvae_labreg_reference(raw, x, k_fwd, L=LATENT))

    mu_dec, lstm_out, latent_vector, mu, log_var, recon_ll, laban_out = outs
    assert mu_dec.shape == (B, T, D)
    assert lstm_out.shape == (B, LATENT)
    assert latent_vector.shape == (B, LATENT)
    assert mu.shape == (B, LATENT)
    assert log_var.shape == (B, LATENT)
    assert recon_ll.shape == (B,)
    assert laban_out.shape == (B, LABAN_OUT)

    names = ["mu_dec", "lstm_out", "latent_vector", "mu", "log_var",
             "recon_likelihood", "laban_out"]
    for name, got, want in zip(names, outs, ref_outs):
        assert jnp.allclose(got, want, rtol=1e-3, atol=1e-3), f"mismatch in {name}"

    print("KERNEL_OK")
</pallas_src>

<mosaic_0001>
module attributes {stable_mosaic.version = 11 : i64} {
  func.func @_fused_forward_kernel(%arg0: i32, %arg1: memref<8x128xf32, #tpu.memory_space<vmem>>, %arg2: memref<128x32xf32, #tpu.memory_space<vmem>>, %arg3: memref<32x32xf32, #tpu.memory_space<vmem>>, %arg4: memref<16x64xf32, #tpu.memory_space<vmem>>, %arg5: memref<64x256xf32, #tpu.memory_space<vmem>>, %arg6: memref<1x640xf32, #tpu.memory_space<vmem>>, %arg7: memref<8x32xf32, #tpu.memory_space<vmem>>, %arg8: memref<1x1xf32, #tpu.memory_space<smem>>, %arg9: memref<8x128xf32, #tpu.memory_space<vmem>>, %arg10: memref<8x128xf32, #tpu.memory_space<vmem>>) attributes {dimension_semantics = [#tpu.dimension_semantics<parallel>], iteration_bounds = array<i64: 1>, scalar_prefetch = 0 : i64, scratch_operands = 0 : i64, tpu.core_type = #tpu.core_type<tc>, window_params = [{transform_indices = @transform_0, window_bounds = array<i64: 8, 128>}, {pipeline_mode = #tpu.pipeline_mode<synchronous>, transform_indices = @transform_1, window_bounds = array<i64: 128, 32>}, {pipeline_mode = #tpu.pipeline_mode<synchronous>, transform_indices = @transform_2, window_bounds = array<i64: 32, 32>}, {pipeline_mode = #tpu.pipeline_mode<synchronous>, transform_indices = @transform_3, window_bounds = array<i64: 16, 64>}, {pipeline_mode = #tpu.pipeline_mode<synchronous>, transform_indices = @transform_4, window_bounds = array<i64: 64, 256>}, {pipeline_mode = #tpu.pipeline_mode<synchronous>, transform_indices = @transform_5, window_bounds = array<i64: 1, 640>}, {transform_indices = @transform_6, window_bounds = array<i64: 8, 32>}, {transform_indices = @transform_7, window_bounds = array<i64: 1, 1>}, {transform_indices = @transform_8, window_bounds = array<i64: 8, 128>}, {transform_indices = @transform_9, window_bounds = array<i64: 8, 128>}]} {
    %c0 = arith.constant 0 : index
    %c0_0 = arith.constant 0 : index
    %0 = vector.load %arg1[%c0, %c0_0] : memref<8x128xf32, #tpu.memory_space<vmem>>, vector<8x128xf32>
    %c0_1 = arith.constant 0 : index
    %c0_2 = arith.constant 0 : index
    %1 = vector.load %arg6[%c0_1, %c0_2] : memref<1x640xf32, #tpu.memory_space<vmem>>, vector<1x32xf32>
    %c0_3 = arith.constant 0 : index
    %c128 = arith.constant 128 : index
    %2 = vector.load %arg6[%c0_3, %c128] : memref<1x640xf32, #tpu.memory_space<vmem>>, vector<1x32xf32>
    %c0_4 = arith.constant 0 : index
    %c256 = arith.constant 256 : index
    %3 = vector.load %arg6[%c0_4, %c256] : memref<1x640xf32, #tpu.memory_space<vmem>>, vector<1x64xf32>
    %c0_5 = arith.constant 0 : index
    %c384 = arith.constant 384 : index
    %4 = vector.load %arg6[%c0_5, %c384] : memref<1x640xf32, #tpu.memory_space<vmem>>, vector<1x256xf32>
    %c0_6 = arith.constant 0 : index
    %c0_7 = arith.constant 0 : index
    %5 = vector.load %arg2[%c0_6, %c0_7] : memref<128x32xf32, #tpu.memory_space<vmem>>, vector<128x32xf32>
    %cst = arith.constant dense<0.000000e+00> : vector<8x32xf32>
    %6 = tpu.matmul %0, %5, %cst {dimension_numbers = #tpu.dot_dimension_numbers<[1], [0], [0], [1], [0, 0, 1, 1], [], []>} : vector<8x128xf32>, vector<128x32xf32>, vector<8x32xf32> -> vector<8x32xf32>
    %7 = vector.broadcast %1 : vector<1x32xf32> to vector<8x32xf32>
    %8 = arith.addf %6, %7 : vector<8x32xf32>
    %cst_8 = arith.constant 0.000000e+00 : f32
    %9 = vector.broadcast %cst_8 : f32 to vector<8x32xf32>
    %10 = arith.maximumf %8, %9 : vector<8x32xf32>
    %c0_9 = arith.constant 0 : index
    %c0_10 = arith.constant 0 : index
    %11 = vector.load %arg3[%c0_9, %c0_10] : memref<32x32xf32, #tpu.memory_space<vmem>>, vector<32x32xf32>
    %cst_11 = arith.constant dense<0.000000e+00> : vector<8x32xf32>
    %12 = tpu.matmul %10, %11, %cst_11 {dimension_numbers = #tpu.dot_dimension_numbers<[1], [0], [0], [1], [0, 0, 1, 1], [], []>} : vector<8x32xf32>, vector<32x32xf32>, vector<8x32xf32> -> vector<8x32xf32>
    %13 = vector.broadcast %2 : vector<1x32xf32> to vector<8x32xf32>
    %14 = arith.addf %12, %13 : vector<8x32xf32>
    %15 = vector.extract_strided_slice %14 {offsets = [0, 0], sizes = [8, 16], strides = [1, 1]} : vector<8x32xf32> to vector<8x16xf32>
    %16 = vector.extract_strided_slice %14 {offsets = [0, 16], sizes = [8, 16], strides = [1, 1]} : vector<8x32xf32> to vector<8x16xf32>
    %cst_12 = arith.constant 5.000000e-01 : f32
    %17 = vector.broadcast %cst_12 : f32 to vector<8x16xf32>
    %18 = arith.mulf %17, %16 : vector<8x16xf32>
    %19 = math.exp %18 : vector<8x16xf32>
    %c0_13 = arith.constant 0 : index
    %c0_14 = arith.constant 0 : index
    %20 = vector.load %arg7[%c0_13, %c0_14] : memref<8x32xf32, #tpu.memory_space<vmem>>, vector<8x32xf32>
    %21 = vector.extract_strided_slice %20 {offsets = [0, 0], sizes = [8, 16], strides = [1, 1]} : vector<8x32xf32> to vector<8x16xf32>
    %22 = arith.mulf %19, %21 : vector<8x16xf32>
    %23 = arith.addf %15, %22 : vector<8x16xf32>
    %24 = vector.extract_strided_slice %20 {offsets = [0, 16], sizes = [8, 16], strides = [1, 1]} : vector<8x32xf32> to vector<8x16xf32>
    %25 = arith.mulf %19, %24 : vector<8x16xf32>
    %26 = arith.addf %15, %25 : vector<8x16xf32>
    %c0_15 = arith.constant 0 : index
    %c0_16 = arith.constant 0 : index
    %27 = vector.load %arg4[%c0_15, %c0_16] : memref<16x64xf32, #tpu.memory_space<vmem>>, vector<16x64xf32>
    %cst_17 = arith.constant dense<0.000000e+00> : vector<8x64xf32>
    %28 = tpu.matmul %26, %27, %cst_17 {dimension_numbers = #tpu.dot_dimension_numbers<[1], [0], [0], [1], [0, 0, 1, 1], [], []>} : vector<8x16xf32>, vector<16x64xf32>, vector<8x64xf32> -> vector<8x64xf32>
    %29 = vector.broadcast %3 : vector<1x64xf32> to vector<8x64xf32>
    %30 = arith.addf %28, %29 : vector<8x64xf32>
    %cst_18 = arith.constant 0.000000e+00 : f32
    %31 = vector.broadcast %cst_18 : f32 to vector<8x64xf32>
    %32 = arith.maximumf %30, %31 : vector<8x64xf32>
    %c0_19 = arith.constant 0 : index
    %c0_20 = arith.constant 0 : index
    %33 = vector.load %arg5[%c0_19, %c0_20] : memref<64x256xf32, #tpu.memory_space<vmem>>, vector<64x256xf32>
    %cst_21 = arith.constant dense<0.000000e+00> : vector<8x256xf32>
    %34 = tpu.matmul %32, %33, %cst_21 {dimension_numbers = #tpu.dot_dimension_numbers<[1], [0], [0], [1], [0, 0, 1, 1], [], []>} : vector<8x64xf32>, vector<64x256xf32>, vector<8x256xf32> -> vector<8x256xf32>
    %35 = vector.broadcast %4 : vector<1x256xf32> to vector<8x256xf32>
    %36 = arith.addf %34, %35 : vector<8x256xf32>
    %37 = vector.extract_strided_slice %36 {offsets = [0, 0], sizes = [8, 128], strides = [1, 1]} : vector<8x256xf32> to vector<8x128xf32>
    %38 = vector.extract_strided_slice %36 {offsets = [0, 128], sizes = [8, 8], strides = [1, 1]} : vector<8x256xf32> to vector<8x8xf32>
    %c0_22 = arith.constant 0 : index
    %c0_23 = arith.constant 0 : index
    %39 = vector.load %arg9[%c0_22, %c0_23] : memref<8x128xf32, #tpu.memory_space<vmem>>, vector<8x128xf32>
    tpu.vector_store %arg9[%c0_22, %c0_23], %37 {strides = array<i32>} : memref<8x128xf32, #tpu.memory_space<vmem>>, vector<8x128xf32>,
    %c0_24 = arith.constant 0 : index
    %c0_25 = arith.constant 0 : index
    %40 = memref.load %arg8[%c0_24, %c0_25] : memref<1x1xf32, #tpu.memory_space<smem>>
    %cst_26 = arith.constant -2.000000e+00 : f32
    %41 = arith.mulf %cst_26, %40 : f32
    %42 = math.exp %41 : f32
    %cst_27 = arith.constant 5.000000e-01 : f32
    %43 = arith.mulf %cst_27, %42 : f32
    %cst_28 = arith.constant 0.918938517 : f32
    %44 = arith.addf %40, %cst_28 : f32
    %45 = arith.subf %0, %37 : vector<8x128xf32>
    %46 = arith.mulf %45, %45 : vector<8x128xf32>
    %cst_29 = arith.constant dense<0.000000e+00> : vector<8xf32>
    %47 = vector.multi_reduction <add>, %46, %cst_29 [1] : vector<8x128xf32> to vector<8xf32>
    %48 = vector.shape_cast %47 : vector<8xf32> to vector<8x1xf32>
    %cst_30 = arith.constant 0.000000e+00 : f32
    %49 = vector.broadcast %cst_30 : f32 to vector<8x1xf32>
    %50 = arith.subf %49, %48 : vector<8x1xf32>
    %51 = vector.broadcast %43 : f32 to vector<8x1xf32>
    %52 = arith.mulf %50, %51 : vector<8x1xf32>
    %cst_31 = arith.constant 1.280000e+02 : f32
    %53 = arith.mulf %cst_31, %44 : f32
    %54 = vector.broadcast %53 : f32 to vector<8x1xf32>
    %55 = arith.subf %52, %54 : vector<8x1xf32>
    %cst_32 = arith.constant 0.000000e+00 : f32
    %56 = vector.broadcast %cst_32 : f32 to vector<8x55xf32>
    %57 = tpu.concatenate %15, %16, %23, %26, %38, %55, %56 in 1 : vector<8x16xf32>, vector<8x16xf32>, vector<8x16xf32>, vector<8x16xf32>, vector<8x8xf32>, vector<8x1xf32>, vector<8x55xf32> -> vector<8x128xf32>
    %c0_33 = arith.constant 0 : index
    %c0_34 = arith.constant 0 : index
    %58 = vector.load %arg10[%c0_33, %c0_34] : memref<8x128xf32, #tpu.memory_space<vmem>>, vector<8x128xf32>
    tpu.vector_store %arg10[%c0_33, %c0_34], %57 {strides = array<i32>} : memref<8x128xf32, #tpu.memory_space<vmem>>, vector<8x128xf32>,
    return
  }
  func.func @transform_0(%arg0: i32) -> (i32, i32) {
    %c0_i32 = arith.constant 0 : i32
    %c0_i32_0 = arith.constant 0 : i32
    return %arg0, %c0_i32 : i32, i32
  }
  func.func @transform_1(%arg0: i32) -> (i32, i32) {
    %c0_i32 = arith.constant 0 : i32
    %c0_i32_0 = arith.constant 0 : i32
    %c0_i32_1 = arith.constant 0 : i32
    return %c0_i32, %c0_i32_0 : i32, i32
  }
  func.func @transform_2(%arg0: i32) -> (i32, i32) {
    %c0_i32 = arith.constant 0 : i32
    %c0_i32_0 = arith.constant 0 : i32
    %c0_i32_1 = arith.constant 0 : i32
    return %c0_i32, %c0_i32_0 : i32, i32
  }
  func.func @transform_3(%arg0: i32) -> (i32, i32) {
    %c0_i32 = arith.constant 0 : i32
    %c0_i32_0 = arith.constant 0 : i32
    %c0_i32_1 = arith.constant 0 : i32
    return %c0_i32, %c0_i32_0 : i32, i32
  }
  func.func @transform_4(%arg0: i32) -> (i32, i32) {
    %c0_i32 = arith.constant 0 : i32
    %c0_i32_0 = arith.constant 0 : i32
    %c0_i32_1 = arith.constant 0 : i32
    return %c0_i32, %c0_i32_0 : i32, i32
  }
  func.func @transform_5(%arg0: i32) -> (i32, i32) {
    %c0_i32 = arith.constant 0 : i32
    %c0_i32_0 = arith.constant 0 : i32
    %c0_i32_1 = arith.constant 0 : i32
    return %c0_i32, %c0_i32_0 : i32, i32
  }
  func.func @transform_6(%arg0: i32) -> (i32, i32) {
    %c0_i32 = arith.constant 0 : i32
    %c0_i32_0 = arith.constant 0 : i32
    return %arg0, %c0_i32 : i32, i32
  }
  func.func @transform_7(%arg0: i32) -> (i32, i32) {
    %c0_i32 = arith.constant 0 : i32
    %c0_i32_0 = arith.constant 0 : i32
    %c0_i32_1 = arith.constant 0 : i32
    return %c0_i32, %c0_i32_0 : i32, i32
  }
  func.func @transform_8(%arg0: i32) -> (i32, i32) {
    %c0_i32 = arith.constant 0 : i32
    %c0_i32_0 = arith.constant 0 : i32
    return %arg0, %c0_i32 : i32, i32
  }
  func.func @transform_9(%arg0: i32) -> (i32, i32) {
    %c0_i32 = arith.constant 0 : i32
    %c0_i32_0 = arith.constant 0 : i32
    return %arg0, %c0_i32 : i32, i32
  }
}

</mosaic_0001>

<llo_original>
// kernel: nvae_labreg_forward.1
$region0: #{nvae_labreg_forward.1}
  #allocation0 [shape = 'u32[]', space=smem, size = 0x4, offset = 0x4, fixed_abs, tag = 'smem constant byte address 0x4 - core index']
  #allocation1 [shape = 'u32[72,128]{1,0:T(1,128)}', space=vmem, size = 0x9000, scoped, tag = 'internal scratch']
  #allocation2 [shape = 'f32[1,1]{1,0:T(1,128)S(6)}', space=smem, size = 0x200, scoped, tag = 'scoped memory for nvae_labreg_forward.1']
  %s0 = inlined_call_operand.vmem [shape: f32[8,128], index: 0, kind: input, shape index: {}]
  %s1 = inlined_call_operand.vmem [shape: f32[128,32], index: 1, kind: input, shape index: {}]
  %s2 = inlined_call_operand.vmem [shape: f32[32,32], index: 2, kind: input, shape index: {}]
  %s3 = inlined_call_operand.vmem [shape: f32[16,64], index: 3, kind: input, shape index: {}]
  %s4 = inlined_call_operand.vmem [shape: f32[64,256], index: 4, kind: input, shape index: {}]
  %s5 = inlined_call_operand.vmem [shape: f32[1,640], index: 5, kind: input, shape index: {}]
  %s6 = inlined_call_operand.vmem [shape: f32[8,32], index: 6, kind: input, shape index: {}]
  %s7 = inlined_call_operand.<no memory space> [shape: f32[1,1], index: 7, kind: input, shape index: {}]
  %s8 = inlined_call_operand.vmem [shape: f32[8,128], index: 8, kind: output, shape index: {0}]
  %s9 = inlined_call_operand.vmem [shape: f32[8,128], index: 9, kind: output, shape index: {1}]
  %10 = xla_tuple %s8, %s9
  %s11 = sld [smem:[#allocation0]]
  $region50: #{nvae_labreg_forward.1} parent=0
    _
  %s13 = ssub.s32 1, %s11
  %s14 = scalar_select 0, %s13, %s11
  %15 = sst [smem:[#allocation2]] %s7
  // Predicated region
  $region2: #{nvae_labreg_forward.1} parent=0 // pred_check
    _
  $region3: #{nvae_labreg_forward.1} parent=0 // pred_check_branch
    %17 = sbr.rel (0) target = $region5
  $region4: #{nvae_labreg_forward.1} parent=0 // pred_region
    _
  $region5: #{nvae_labreg_forward.1} parent=0 // pred_fallthru
    _
  // Predicated region
  $region6: #{nvae_labreg_forward.1} parent=0 // pred_check
    _
  $region7: #{nvae_labreg_forward.1} parent=0 // pred_check_branch
    %19 = sbr.rel (0) target = $region9
  $region8: #{nvae_labreg_forward.1} parent=0 // pred_region
    _
  $region9: #{nvae_labreg_forward.1} parent=0 // pred_fallthru
    _
  // Predicated region
  $region10: #{nvae_labreg_forward.1} parent=0 // pred_check
    _
  $region11: #{nvae_labreg_forward.1} parent=0 // pred_check_branch
    %21 = sbr.rel (0) target = $region13
  $region12: #{nvae_labreg_forward.1} parent=0 // pred_region
    _
  $region13: #{nvae_labreg_forward.1} parent=0 // pred_fallthru
    _
  // Predicated region
  $region14: #{nvae_labreg_forward.1} parent=0 // pred_check
    _
  $region15: #{nvae_labreg_forward.1} parent=0 // pred_check_branch
    %23 = sbr.rel (0) target = $region17
  $region16: #{nvae_labreg_forward.1} parent=0 // pred_region
    _
  $region17: #{nvae_labreg_forward.1} parent=0 // pred_fallthru
    _
  // Predicated region
  $region18: #{nvae_labreg_forward.1} parent=0 // pred_check
    _
  $region19: #{nvae_labreg_forward.1} parent=0 // pred_check_branch
    %25 = sbr.rel (0) target = $region21
  $region20: #{nvae_labreg_forward.1} parent=0 // pred_region
    _
  $region21: #{nvae_labreg_forward.1} parent=0 // pred_fallthru
    _
  // Predicated region
  $region22: #{nvae_labreg_forward.1} parent=0 // pred_check
    _
  $region23: #{nvae_labreg_forward.1} parent=0 // pred_check_branch
    %27 = sbr.rel (0) target = $region25
  $region24: #{nvae_labreg_forward.1} parent=0 // pred_region
    _
  $region25: #{nvae_labreg_forward.1} parent=0 // pred_fallthru
    _
  // Predicated region
  $region26: #{nvae_labreg_forward.1} parent=0 // pred_check
    _
  $region27: #{nvae_labreg_forward.1} parent=0 // pred_check_branch
    %29 = sbr.rel (0) target = $region29
  $region28: #{nvae_labreg_forward.1} parent=0 // pred_region
    _
  $region29: #{nvae_labreg_forward.1} parent=0 // pred_fallthru
    _
  // Predicated region
  $region30: #{nvae_labreg_forward.1} parent=0 // pred_check
    _
  $region31: #{nvae_labreg_forward.1} parent=0 // pred_check_branch
    %31 = sbr.rel (0) target = $region33
  $region32: #{nvae_labreg_forward.1} parent=0 // pred_region
    _
  $region33: #{nvae_labreg_forward.1} parent=0 // pred_fallthru
    _
  %v32 = vld [vmem:[%s0] sm:$0xff]
  %v33 = vld [vmem:[%s5] sm:$0x1]
  %v34 = vld [vmem:[%s5 + $0x1] sm:$0x1]
  %v35 = vld [vmem:[%s5 + $0x2] sm:$0x1]
  %v36 = vld [vmem:[%s5 + $0x3] sm:$0x3]
  %v37 = vld [vmem:[%s1] sm:$0xff]
  %v38 = vld [vmem:[%s1 + $0x8] sm:$0xff]
  %v39 = vld [vmem:[%s1 + $0x10] sm:$0xff]
  %v40 = vld [vmem:[%s1 + $0x18] sm:$0xff]
  %v41 = vld [vmem:[%s1 + $0x20] sm:$0xff]
  %v42 = vld [vmem:[%s1 + $0x28] sm:$0xff]
  %v43 = vld [vmem:[%s1 + $0x30] sm:$0xff]
  %v44 = vld [vmem:[%s1 + $0x38] sm:$0xff]
  %v45 = vld [vmem:[%s1 + $0x40] sm:$0xff]
  %v46 = vld [vmem:[%s1 + $0x48] sm:$0xff]
  %v47 = vld [vmem:[%s1 + $0x50] sm:$0xff]
  %v48 = vld [vmem:[%s1 + $0x58] sm:$0xff]
  %v49 = vld [vmem:[%s1 + $0x60] sm:$0xff]
  %v50 = vld [vmem:[%s1 + $0x68] sm:$0xff]
  %v51 = vld [vmem:[%s1 + $0x70] sm:$0xff]
  %v52 = vld [vmem:[%s1 + $0x78] sm:$0xff]
  %v54 = vperm.slane %v33, 0
  %56 = vmatpush.msra.mxu0 %v52
  %57 = vmatpush.msra.mxu0 %v51
  %58 = vmatpush.msra.mxu0 %v50
  %59 = vmatpush.msra.mxu0 %v49
  %60 = vmatpush.msra.mxu0 %v48
  %61 = vmatpush.msra.mxu0 %v47
  %62 = vmatpush.msra.mxu0 %v46
  %63 = vmatpush.msra.mxu0 %v45
  %64 = vmatpush.msra.mxu0 %v44
  %65 = vmatpush.msra.mxu0 %v43
  %66 = vmatpush.msra.mxu0 %v42
  %67 = vmatpush.msra.mxu0 %v41
  %68 = vmatpush.msra.mxu0 %v40
  %69 = vmatpush.msra.mxu0 %v39
  %70 = vmatpush.msra.mxu0 %v38
  %71 = vmatpush.msra.mxu0 %v37
  %72 = vmatmul.f32.gmra.mxu0 %v32
  %v73 = vpop.f32.mrf.mxu0
  %v74 = vadd.f32 %v54, %v73
  %75 = vdwg.mxu0
  %v76 = vmax.f32 %v74, 0.0
  %v77 = vld [vmem:[%s2] sm:$0xff]
  %v78 = vld [vmem:[%s2 + $0x8] sm:$0xff]
  %v79 = vld [vmem:[%s2 + $0x10] sm:$0xff]
  %v80 = vld [vmem:[%s2 + $0x18] sm:$0xff]
  %v82 = vperm.slane %v34, 0
  %vm84 = vcmask 261120
  %v86 = vsel %vm84, %v76, 0
  %88 = vmatpush.msra.mxu0 0.0
  %89 = vmatpush.msra.mxu0 0.0
  %90 = vmatpush.msra.mxu0 0.0
  %91 = vmatpush.msra.mxu0 0.0
  %92 = vmatpush.msra.mxu0 0.0
  %93 = vmatpush.msra.mxu0 0.0
  %94 = vmatpush.msra.mxu0 0.0
  %95 = vmatpush.msra.mxu0 0.0
  %96 = vmatpush.msra.mxu0 0.0
  %97 = vmatpush.msra.mxu0 0.0
  %98 = vmatpush.msra.mxu0 0.0
  %99 = vmatpush.msra.mxu0 0.0
  %100 = vmatpush.msra.mxu0 %v80
  %101 = vmatpush.msra.mxu0 %v79
  %102 = vmatpush.msra.mxu0 %v78
  %103 = vmatpush.msra.mxu0 %v77
  %104 = vmatmul.f32.gmra.mxu0 %v86
  %v105 = vpop.f32.mrf.mxu0
  %v106 = vadd.f32 %v82, %v105
  %107 = vdwg.mxu0
  %v108 = vmul.f32 %v106, 0.5
  %v109 = vmul.f32 %v108, 1.442695
  %v110 = vpow.pop %v109
  %v111 = vld [vmem:[%s6] sm:$0xff]
  %113 = vrot.lane.b32.xlu0 %v111, 16
  %v114 = vpop.permute.xlu0 %113
  %v116 = vmul.f32 %v110, %v114
  %118 = vrot.lane.b32.xlu0 %v116, 112
  %v119 = vpop.permute.xlu0 %118
  %v121 = vadd.f32 %v106, %v119
  %v122 = vmul.f32 %v110, %v111
  %124 = vrot.lane.b32.xlu0 %v122, 112
  %v125 = vpop.permute.xlu0 %124
  %v127 = vadd.f32 %v106, %v125
  %v128 = vld [vmem:[%s3] sm:$0xff]
  %v129 = vld [vmem:[%s3 + $0x8] sm:$0xff]
  %v131 = vperm.slane %v35, 0
  %vm133 = vcmask 130048
  %v135 = vsel %vm133, %v127, 0
  %137 = vmatpush.msra.mxu0 0.0
  %138 = vmatpush.msra.mxu0 0.0
  %139 = vmatpush.msra.mxu0 0.0
  %140 = vmatpush.msra.mxu0 0.0
  %141 = vmatpush.msra.mxu0 0.0
  %142 = vmatpush.msra.mxu0 0.0
  %143 = vmatpush.msra.mxu0 0.0
  %144 = vmatpush.msra.mxu0 0.0
  %145 = vmatpush.msra.mxu0 0.0
  %146 = vmatpush.msra.mxu0 0.0
  %147 = vmatpush.msra.mxu0 0.0
  %148 = vmatpush.msra.mxu0 0.0
  %149 = vmatpush.msra.mxu0 0.0
  %150 = vmatpush.msra.mxu0 0.0
  %151 = vmatpush.msra.mxu0 %v129
  %152 = vmatpush.msra.mxu0 %v128
  %153 = vmatmul.f32.gmra.mxu0 %v135
  %v154 = vpop.f32.mrf.mxu0
  %v155 = vadd.f32 %v131, %v154
  %156 = vdwg.mxu0
  %v157 = vmax.f32 %v155, 0.0
  %v158 = vld [vmem:[%s4] sm:$0xff]
  %v159 = vld [vmem:[%s4 + $0x8] sm:$0xff]
  %v160 = vld [vmem:[%s4 + $0x10] sm:$0xff]
  %v161 = vld [vmem:[%s4 + $0x18] sm:$0xff]
  %v162 = vld [vmem:[%s4 + $0x20] sm:$0xff]
  %v163 = vld [vmem:[%s4 + $0x28] sm:$0xff]
  %v164 = vld [vmem:[%s4 + $0x30] sm:$0xff]
  %v165 = vld [vmem:[%s4 + $0x38] sm:$0xff]
  %v166 = vld [vmem:[%s4 + $0x40] sm:$0xff]
  %v167 = vld [vmem:[%s4 + $0x48] sm:$0xff]
  %v168 = vld [vmem:[%s4 + $0x50] sm:$0xff]
  %v169 = vld [vmem:[%s4 + $0x58] sm:$0xff]
  %v170 = vld [vmem:[%s4 + $0x60] sm:$0xff]
  %v171 = vld [vmem:[%s4 + $0x68] sm:$0xff]
  %v172 = vld [vmem:[%s4 + $0x70] sm:$0xff]
  %v173 = vld [vmem:[%s4 + $0x78] sm:$0xff]
  %v175 = vperm.slane %v36, 0
  %v176 = vperm.slane %v36, 1
  %vm179 = vcmask 523264
  %v181 = vsel %vm179, %v157, 0
  %183 = vmatpush.msra.mxu0 0.0
  %184 = vmatpush.msra.mxu0 0.0
  %185 = vmatpush.msra.mxu0 0.0
  %186 = vmatpush.msra.mxu0 0.0
  %187 = vmatpush.msra.mxu0 0.0
  %188 = vmatpush.msra.mxu0 0.0
  %189 = vmatpush.msra.mxu0 0.0
  %190 = vmatpush.msra.mxu0 0.0
  %191 = vmatpush.msra.mxu0 %v172
  %192 = vmatpush.msra.mxu0 %v170
  %193 = vmatpush.msra.mxu0 %v168
  %194 = vmatpush.msra.mxu0 %v166
  %195 = vmatpush.msra.mxu0 %v164
  %196 = vmatpush.msra.mxu0 %v162
  %197 = vmatpush.msra.mxu0 %v160
  %198 = vmatpush.msra.mxu0 %v158
  %199 = vmatmul.f32.gmra.mxu0 %v181
  %v200 = vpop.f32.mrf.mxu0
  %v201 = vadd.f32 %v175, %v200
  %202 = vdwg.mxu0
  %203 = vmatpush.msra.mxu0 0.0
  %204 = vmatpush.msra.mxu0 0.0
  %205 = vmatpush.msra.mxu0 0.0
  %206 = vmatpush.msra.mxu0 0.0
  %207 = vmatpush.msra.mxu0 0.0
  %208 = vmatpush.msra.mxu0 0.0
  %209 = vmatpush.msra.mxu0 0.0
  %210 = vmatpush.msra.mxu0 0.0
  %211 = vmatpush.msra.mxu0 %v173
  %212 = vmatpush.msra.mxu0 %v171
  %213 = vmatpush.msra.mxu0 %v169
  %214 = vmatpush.msra.mxu0 %v167
  %215 = vmatpush.msra.mxu0 %v165
  %216 = vmatpush.msra.mxu0 %v163
  %217 = vmatpush.msra.mxu0 %v161
  %218 = vmatpush.msra.mxu0 %v159
  %219 = vmatmul.f32.gmra.mxu0 %v181
  %v220 = vpop.f32.mrf.mxu0
  %v221 = vadd.f32 %v176, %v220
  %222 = vdwg.mxu0
  %223 = vst [vmem:[%s8] sm:$0xff] %v201
  %s224 = sld [smem:[#allocation2]]
  %s225 = smul.f32 %s224, -2.0
  %v226 = vstv %s225
  %v227 = vmul.f32 %v226, 1.442695
  %v228 = vpow.pop %v227
  %s229 = vtos %v228
  %s230 = smul.f32 %s229, 0.5
  %s231 = sadd.f32 %s224, 0.9189385
  %v232 = vsub.f32 %v32, %v201
  %v233 = vmul.f32 %v232, %v232
  %234 = vadd.xlane.f32.xlu0 %v233
  %v235 = vpop.xlane.xlu0 %234
  %v236 = vsub.f32 0.0, %v235
  %v237 = vstv %s230
  %v238 = vmul.f32 %v236, %v237
  %s239 = smul.f32 %s231, 128.0
  %v240 = vstv %s239
  %v241 = vsub.f32 %v238, %v240
  %243 = vrot.lane.b32.xlu0 %v121, 32
  %v244 = vpop.permute.xlu0 %243
  %246 = vrot.lane.b32.xlu0 %v127, 48
  %v247 = vpop.permute.xlu0 %246
  %250 = vrot.lane.b32.xlu0 %v221, 64
  %v251 = vpop.permute.xlu0 %250
  %v253 = vsel %vm84, %v106, %v244
  %vm254 = vcmask 392192
  %v255 = vsel %vm254, %v253, %v247
  %v256 = vsel %vm179, %v255, %v251
  %vm257 = vcmask 588800
  %v258 = vsel %vm257, %v256, %v241
  %vm259 = vcmask 596992
  %v260 = vsel %vm259, %v258, 0.0
  %261 = vst [vmem:[%s9] sm:$0xff] %v260
  // Predicated region
  $region34: #{nvae_labreg_forward.1} parent=0 // pred_check
    _
  $region35: #{nvae_labreg_forward.1} parent=0 // pred_check_branch
    %263 = sbr.rel (0) target = $region37
  $region36: #{nvae_labreg_forward.1} parent=0 // pred_region
    _
  $region37: #{nvae_labreg_forward.1} parent=0 // pred_fallthru
    _
  // Predicated region
  $region38: #{nvae_labreg_forward.1} parent=0 // pred_check
    _
  $region39: #{nvae_labreg_forward.1} parent=0 // pred_check_branch
    %265 = sbr.rel (0) target = $region41
  $region40: #{nvae_labreg_forward.1} parent=0 // pred_region
    _
  $region41: #{nvae_labreg_forward.1} parent=0 // pred_fallthru
    _
  // Predicated region
  $region42: #{nvae_labreg_forward.1} parent=0 // pred_check
    _
  $region43: #{nvae_labreg_forward.1} parent=0 // pred_check_branch
    %267 = sbr.rel (0) target = $region45
  $region44: #{nvae_labreg_forward.1} parent=0 // pred_region
    _
  $region45: #{nvae_labreg_forward.1} parent=0 // pred_fallthru
    _
  // Predicated region
  $region46: #{nvae_labreg_forward.1} parent=0 // pred_check
    _
  $region47: #{nvae_labreg_forward.1} parent=0 // pred_check_branch
    %269 = sbr.rel (0) target = $region49
  $region48: #{nvae_labreg_forward.1} parent=0 // pred_region
    _
  $region49: #{nvae_labreg_forward.1} parent=0 // pred_fallthru
    _

</llo_original>
